<compile_context>
chip_gen: v7x
topology: tpu7x:2x2x1
jax: 0.10.0
libtpu: 0.0.40
codegen_flags: <defaults>
</compile_context>

<pallas_src>
import functools
import math

import jax
import jax.numpy as jnp
from jax import lax
from jax.experimental import pallas as pl
from jax.experimental.pallas import tpu as pltpu


def _attn_kernel(seed_ref, q_ref, k_ref, v_ref, m_ref, o_ref, *,
                 dropout_p, scale, lq, lk, tq):
    """One (head, q-tile) step: scores -> +mask -> softmax -> dropout -> @V."""
    if dropout_p >= 1.0:
        # torch.dropout(x, 1, True) zeroes everything -> output is exactly 0.
        o_ref[...] = jnp.zeros(o_ref.shape, o_ref.dtype)
        return

    q = q_ref[0]                              # (TQ, D)  native dtype
    k = k_ref[0]                              # (LK, D)
    v = v_ref[0]                              # (LK, DV)
    mask = m_ref[0].astype(jnp.float32)       # (TQ, LK)

    # (TQ, LK) scores; contract last dims of both operands (no k.T transpose).
    scores = lax.dot_general(
        q, k, dimension_numbers=(((1,), (1,)), ((), ())),
        preferred_element_type=jnp.float32)
    scores = scores * scale + mask

    # Numerically-stable softmax numerator; the denominator is folded into a
    # per-row rescale of the (TQ, DV) result instead of dividing the full
    # (TQ, LK) weight tile.
    smax = jnp.max(scores, axis=-1, keepdims=True)
    e = jnp.exp(scores - smax)
    denom = jnp.sum(e, axis=-1, keepdims=True)

    if dropout_p > 0.0:
        # Stateless counter-based RNG (lowbias32 hash) + one unsigned compare
        # per element (no float conversion / multiply / float compare).
        thresh = jnp.uint32(min(int(round(dropout_p * 4294967296.0)),
                                4294967295))
        row = lax.broadcasted_iota(jnp.int32, e.shape, 0).astype(jnp.uint32)
        col = lax.broadcasted_iota(jnp.int32, e.shape, 1).astype(jnp.uint32)
        bh = pl.program_id(0).astype(jnp.uint32)
        qi = pl.program_id(1).astype(jnp.uint32)
        seed_u = seed_ref[0].astype(jnp.uint32)
        ctr = (bh * jnp.uint32(lq) + qi * jnp.uint32(tq) + row) \
            * jnp.uint32(lk) + col
        x = ctr + (seed_u + jnp.uint32(1)) * jnp.uint32(0x9E3779B9)
        x = x ^ (x >> jnp.uint32(16))
        x = x * jnp.uint32(0x7FEB352D)
        x = x ^ (x >> jnp.uint32(15))
        x = x * jnp.uint32(0x846CA68B)
        x = x ^ (x >> jnp.uint32(16))
        e = jnp.where(x >= thresh, e, 0.0)
        keep_scale = 1.0 / (1.0 - dropout_p)
    else:
        keep_scale = 1.0

    out = jnp.dot(e.astype(v.dtype), v, preferred_element_type=jnp.float32)
    out = out * (keep_scale / denom)          # (TQ, 1) broadcast over DV
    o_ref[0] = out.astype(o_ref.dtype)


def attention_dropout(query, key, value, attn_mask, dropout_p, seed=0,
                      q_tile=None):
    """query (B,H,Lq,D), key (B,H,Lk,D), value (B,H,Lk,Dv),
    attn_mask broadcastable to (B,H,Lq,Lk). Returns (B,H,Lq,Dv)."""
    query = jnp.asarray(query)
    key = jnp.asarray(key)
    value = jnp.asarray(value)
    B, H, Lq, D = query.shape
    Lk = key.shape[2]
    Dv = value.shape[3]
    BH = B * H
    dropout_p = float(dropout_p)

    # Flatten (B, H) -> BH; keep native dtypes (no f32 upcast in the wrapper).
    q2 = query.reshape(BH, Lq, D)
    k2 = key.reshape(BH, Lk, D)
    v2 = value.reshape(BH, Lk, Dv)

    # Keep the mask un-broadcast over B/H; the index_map selects the block.
    m = jnp.asarray(attn_mask)
    if m.ndim < 4:
        m = m.reshape((1,) * (4 - m.ndim) + m.shape)
    mB, mH = m.shape[0], m.shape[1]
    if m.shape[2] != Lq or m.shape[3] != Lk:
        m = jnp.broadcast_to(m, (mB, mH, Lq, Lk))
    m3 = m.reshape(mB * mH, Lq, Lk)

    # Q-tile size: whole head for small Lq, bounded 256-row tiles otherwise
    # (keeps the working set inside VMEM on every generation incl. v7x).
    if q_tile is None:
        q_tile = Lq if Lq <= 512 else 256
    TQ = min(int(q_tile), Lq)
    nq = pl.cdiv(Lq, TQ)

    def mask_index_map(bh, qi):
        b = bh // H if (mB == B and B > 1) else 0
        h = bh % H if (mH == H and H > 1) else 0
        return (b * mH + h, qi, 0)

    out_dtype = query.dtype
    seed_arr = jnp.asarray([seed], dtype=jnp.int32)

    kernel = functools.partial(
        _attn_kernel, dropout_p=dropout_p, scale=1.0 / math.sqrt(D),
        lq=Lq, lk=Lk, tq=TQ)

    def _nbytes(a):
        return a.size * a.dtype.itemsize

    cost = pl.CostEstimate(
        flops=2 * BH * Lq * Lk * (D + Dv),
        transcendentals=BH * Lq * Lk,
        bytes_accessed=_nbytes(q2) + _nbytes(k2) + _nbytes(v2) + _nbytes(m3)
        + BH * Lq * Dv * jnp.dtype(out_dtype).itemsize)

    out = pl.pallas_call(
        kernel,
        out_shape=jax.ShapeDtypeStruct((BH, Lq, Dv), out_dtype),
        grid=(BH, nq),
        in_specs=[
            pl.BlockSpec(memory_space=pltpu.MemorySpace.SMEM),      # seed
            pl.BlockSpec((1, TQ, D), lambda bh, qi: (bh, qi, 0)),   # q
            pl.BlockSpec((1, Lk, D), lambda bh, qi: (bh, 0, 0)),    # k
            pl.BlockSpec((1, Lk, Dv), lambda bh, qi: (bh, 0, 0)),   # v
            pl.BlockSpec((1, TQ, Lk), mask_index_map),              # mask
        ],
        out_specs=pl.BlockSpec((1, TQ, Dv), lambda bh, qi: (bh, qi, 0)),
        compiler_params=pltpu.CompilerParams(
            dimension_semantics=("parallel", "parallel")),
        cost_estimate=cost,
    )(seed_arr, q2, k2, v2, m3)

    return out.reshape(B, H, Lq, Dv)


def _reference_no_dropout(query, key, value, attn_mask):
    d = query.shape[-1]
    qk = jnp.einsum("bhqd,bhkd->bhqk", query, key) / math.sqrt(d)
    qk = qk + attn_mask
    w = jax.nn.softmax(qk, axis=-1)
    return jnp.einsum("bhqk,bhkv->bhqv", w, value)


if __name__ == "__main__":
    # Shapes implied by the module's forward: query (1,2,3,4), key (1,2,6,4),
    # value (1,2,6,5); mask made broadcast-compatible with the (1,2,3,6) scores.
    B, H, Lq, Lk, D, Dv = 1, 2, 3, 6, 4, 5
    k0 = jax.random.PRNGKey(0)
    kq, kk, kv, km = jax.random.split(k0, 4)
    query = jax.random.normal(kq, (B, H, Lq, D), dtype=jnp.float32)
    key = jax.random.normal(kk, (B, H, Lk, D), dtype=jnp.float32)
    value = jax.random.normal(kv, (B, H, Lk, Dv), dtype=jnp.float32)
    attn_mask = jax.random.normal(km, (1, H, Lq, Lk), dtype=jnp.float32)

    # The module's call: dropout_p = 1 (train=True) -> output is exactly zero.
    out = attention_dropout(query, key, value, attn_mask, dropout_p=1.0, seed=0)
    out = jax.block_until_ready(out)
    assert out.shape == (B, H, Lq, Dv)
    assert bool(jnp.all(out == 0.0)), "dropout_p=1 must zero the output"

    # Attention math path (dropout disabled) against a pure-JAX reference.
    out_p0 = jax.block_until_ready(
        attention_dropout(query, key, value, attn_mask, 0.0, seed=0))
    ref = _reference_no_dropout(query, key, value, attn_mask)
    assert bool(jnp.allclose(out_p0, ref, atol=1e-5, rtol=1e-5))

    # Exercise the 0 < p < 1 path (counter-hash RNG + integer threshold).
    out_p5 = jax.block_until_ready(
        attention_dropout(query, key, value, attn_mask, 0.5, seed=123))
    assert out_p5.shape == (B, H, Lq, Dv)
    assert bool(jnp.all(jnp.isfinite(out_p5)))

    print("KERNEL_OK")
</pallas_src>

<mosaic_0001>
module attributes {stable_mosaic.version = 11 : i64} {
  func.func @_attn_kernel(%arg0: i32, %arg1: i32, %arg2: memref<1xi32, #tpu.memory_space<smem>>, %arg3: memref<1x3x4xf32, #tpu.memory_space<vmem>>, %arg4: memref<1x6x4xf32, #tpu.memory_space<vmem>>, %arg5: memref<1x6x5xf32, #tpu.memory_space<vmem>>, %arg6: memref<1x3x6xf32, #tpu.memory_space<vmem>>, %arg7: memref<1x3x5xf32, #tpu.memory_space<vmem>>) attributes {dimension_semantics = [#tpu.dimension_semantics<parallel>, #tpu.dimension_semantics<parallel>], iteration_bounds = array<i64: 2, 1>, scalar_prefetch = 0 : i64, scratch_operands = 0 : i64, tpu.core_type = #tpu.core_type<tc>, window_params = [{transform_indices = @transform_0, window_bounds = array<i64: 1>}, {transform_indices = @transform_1, window_bounds = array<i64: 1, 3, 4>}, {transform_indices = @transform_2, window_bounds = array<i64: 1, 6, 4>}, {transform_indices = @transform_3, window_bounds = array<i64: 1, 6, 5>}, {transform_indices = @transform_4, window_bounds = array<i64: 1, 3, 6>}, {transform_indices = @transform_5, window_bounds = array<i64: 1, 3, 5>}]} {
    %cst = arith.constant 0.000000e+00 : f32
    %0 = vector.broadcast %cst : f32 to vector<1x3x5xf32>
    %c0 = arith.constant 0 : index
    %c0_0 = arith.constant 0 : index
    %c0_1 = arith.constant 0 : index
    %1 = vector.load %arg7[%c0, %c0_0, %c0_1] : memref<1x3x5xf32, #tpu.memory_space<vmem>>, vector<1x3x5xf32>
    tpu.vector_store %arg7[%c0, %c0_0, %c0_1], %0 {strides = array<i32>} : memref<1x3x5xf32, #tpu.memory_space<vmem>>, vector<1x3x5xf32>,
    return
  }
  func.func @transform_0(%arg0: i32, %arg1: i32) -> i32 {
    %c0_i32 = arith.constant 0 : i32
    %c0_i32_0 = arith.constant 0 : i32
    return %c0_i32 : i32
  }
  func.func @transform_1(%arg0: i32, %arg1: i32) -> (i32, i32, i32) {
    %c0_i32 = arith.constant 0 : i32
    %c0_i32_0 = arith.constant 0 : i32
    return %arg0, %arg1, %c0_i32 : i32, i32, i32
  }
  func.func @transform_2(%arg0: i32, %arg1: i32) -> (i32, i32, i32) {
    %c0_i32 = arith.constant 0 : i32
    %c0_i32_0 = arith.constant 0 : i32
    %c0_i32_1 = arith.constant 0 : i32
    return %arg0, %c0_i32, %c0_i32_0 : i32, i32, i32
  }
  func.func @transform_3(%arg0: i32, %arg1: i32) -> (i32, i32, i32) {
    %c0_i32 = arith.constant 0 : i32
    %c0_i32_0 = arith.constant 0 : i32
    %c0_i32_1 = arith.constant 0 : i32
    return %arg0, %c0_i32, %c0_i32_0 : i32, i32, i32
  }
  func.func @transform_4(%arg0: i32, %arg1: i32) -> (i32, i32, i32) {
    %c2_i32 = arith.constant 2 : i32
    %c0_i32 = arith.constant 0 : i32
    %0 = arith.cmpi eq, %c2_i32, %c0_i32 : i32
    %c1_i32 = arith.constant 1 : i32
    %1 = arith.select %0, %c1_i32, %c2_i32 : i32
    %2 = arith.remsi %arg0, %1 : i32
    %c0_i32_0 = arith.constant 0 : i32
    %3 = arith.cmpi ne, %2, %c0_i32_0 : i32
    %c0_i32_1 = arith.constant 0 : i32
    %4 = arith.cmpi slt, %2, %c0_i32_1 : i32
    %c0_i32_2 = arith.constant 0 : i32
    %5 = arith.cmpi slt, %1, %c0_i32_2 : i32
    %6 = arith.xori %4, %5 : i1
    %7 = arith.andi %6, %3 : i1
    %8 = arith.addi %2, %1 : i32
    %9 = arith.select %7, %8, %2 : i32
    %c0_i32_3 = arith.constant 0 : i32
    %10 = arith.addi %c0_i32_3, %9 : i32
    %c0_i32_4 = arith.constant 0 : i32
    %c0_i32_5 = arith.constant 0 : i32
    return %10, %arg1, %c0_i32_4 : i32, i32, i32
  }
  func.func @transform_5(%arg0: i32, %arg1: i32) -> (i32, i32, i32) {
    %c0_i32 = arith.constant 0 : i32
    %c0_i32_0 = arith.constant 0 : i32
    return %arg0, %arg1, %c0_i32 : i32, i32, i32
  }
}

</mosaic_0001>

<llo_original>
// kernel: tpu_custom_call.1
$region0: #{tpu_custom_call.1}
  #allocation0 [shape = 'u32[]', space=smem, size = 0x4, offset = 0x4, fixed_abs, tag = 'smem constant byte address 0x4 - core index']
  #allocation1 [shape = 'u32[144,128]{1,0:T(1,128)}', space=vmem, size = 0x12000, scoped, tag = 'internal scratch']
  #allocation2 [shape = 's32[1]{0:T(128)S(6)}', space=smem, size = 0x200, scoped, tag = 'scoped memory for tpu_custom_call.1']
  %s0 = inlined_call_operand.<no memory space> [shape: s32[1], index: 0, kind: input, shape index: {}]
  %s1 = inlined_call_operand.vmem [shape: f32[2,3,4], index: 1, kind: input, shape index: {}]
  %s2 = inlined_call_operand.vmem [shape: f32[2,6,4], index: 2, kind: input, shape index: {}]
  %s3 = inlined_call_operand.vmem [shape: f32[2,6,5], index: 3, kind: input, shape index: {}]
  %s4 = inlined_call_operand.vmem [shape: f32[2,3,6], index: 4, kind: input, shape index: {}]
  %s5 = inlined_call_operand.vmem [shape: f32[2,3,5], index: 5, kind: output, shape index: {}]
  %s6 = sld [smem:[#allocation0]]
  $region53: #{tpu_custom_call.1} parent=0
    _
  %s8 = ssub.s32 1, %s6
  %s9 = scalar_select 0, %s8, %s6
  %10 = sst [smem:[#allocation2]] %s0
  loop: start=0, step=1, limit=4
  $region2: #{tpu_custom_call.1} parent=0 // loop_pre_header
    _
  $region3: #{tpu_custom_call.1} parent=0 // loop_header
    %s12 = sphi 0, %s16
    %p13 = scmp.ge.s32.totalorder %s12, 4
    %s19 = sphi 0, %s31
    %s20 = sphi 0, %s27
    %s21 = sphi 0, %s19
    %s22 = sphi 0, %s20
    %s23 = sphi 0, %s21
    %s24 = sphi 0, %s22
    %s32 = sphi 0, %s32
    %s34 = sphi 0, %s32
    %s35 = sphi 0, %s34
    %s49 = sphi 0, %s35
    %s57 = sphi 0, %s59
    %s60 = sphi 0, %s57
    %s61 = sphi 0, %s60
    %s77 = sphi 0, %s61
    %s83 = sphi 0, %s85
    %s86 = sphi 0, %s83
    %s87 = sphi 0, %s86
    %s103 = sphi 0, %s87
    %s109 = sphi 0, %s111
    %s112 = sphi 0, %s109
    %s113 = sphi 0, %s112
    %s129 = sphi 0, %s113
    %s161 = sphi 0, %s163
    %s164 = sphi 0, %s161
    %s165 = sphi 0, %s164
    %s181 = sphi 0, %s165
    %s189 = sphi 0, %s191
    %s192 = sphi 0, %s189
    %s193 = sphi 0, %s192
    %s209 = sphi 0, %s193
  $region4: #{tpu_custom_call.1} parent=0 // loop_header_branch
    %15 = sbr.rel (%p13) target = $region8
  $region5: #{tpu_custom_call.1} parent=0 // loop_body
    %s17 = ssub.s32 %s12, 1
    %s18 = ssub.s32 %s12, 2
    %s25 = sadd.s32 1, %s20
    %p26 = scmp.ge.s32.totalorder %s25, 1
    %s27 = scalar_select %p26, 0, %s25
    %s28 = sadd.s32 1, %s19
    %s29 = scalar_select %p26, %s28, %s19
    %p30 = scmp.ge.s32.totalorder %s29, 2
    %s31 = scalar_select %p30, 0, %s29
    %s33 = sadd.s32 %s32, 1
    %p36 = scmp.eq.s32.totalorder %s12, 1
    %p37 = scmp.ne.s32.totalorder %s32, %s34
    %p38 = scmp.eq.s32.totalorder %s12, 0
    %p39 = por %p37, %p38
    %p40 = scmp.ne.s32.totalorder %s32, %s34
    %p41 = scmp.eq.s32.totalorder %s17, 1
    %p42 = por %p40, %p41
    %p43 = scmp.ne.s32.totalorder %s34, %s35
    %p44 = scmp.eq.s32.totalorder %s17, 0
    %p45 = por %p43, %p44
    %p46 = scmp.ne.s32.totalorder %s34, %s35
    %p47 = scmp.eq.s32.totalorder %s18, 1
    %p48 = por %p46, %p47
    %p50 = scmp.ne.s32.totalorder %s35, %s49
    %p51 = scmp.eq.s32.totalorder %s18, 0
    %p52 = por %p50, %p51
    %s53 = ssub.s32 %s19, %s31
    %s54 = ssub.s32 %s20, %s27
    %s55 = sor.u32 %s53, %s54
    %p56 = scmp.eq.s32.totalorder %s55, 0
    %s58 = sadd.s32 %s57, 1
    %s59 = scalar_select %p56, %s57, %s58
    %p62 = pneg %p56
    %p63 = scmp.eq.s32.totalorder %s12, 1
    %p64 = por %p62, %p63
    %p65 = scmp.ne.s32.totalorder %s57, %s60
    %p66 = scmp.eq.s32.totalorder %s12, 0
    %p67 = por %p65, %p66
    %p68 = scmp.ne.s32.totalorder %s57, %s60
    %p69 = scmp.eq.s32.totalorder %s17, 1
    %p70 = por %p68, %p69
    %p71 = scmp.ne.s32.totalorder %s60, %s61
    %p72 = scmp.eq.s32.totalorder %s17, 0
    %p73 = por %p71, %p72
    %p74 = scmp.ne.s32.totalorder %s60, %s61
    %p75 = scmp.eq.s32.totalorder %s18, 1
    %p76 = por %p74, %p75
    %p78 = scmp.ne.s32.totalorder %s61, %s77
    %p79 = scmp.eq.s32.totalorder %s18, 0
    %p80 = por %p78, %p79
    %s81 = ssub.s32 %s19, %s31
    %p82 = scmp.eq.s32.totalorder %s81, 0
    %s84 = sadd.s32 %s83, 1
    %s85 = scalar_select %p82, %s83, %s84
    %p88 = pneg %p82
    %p89 = scmp.eq.s32.totalorder %s12, 1
    %p90 = por %p88, %p89
    %p91 = scmp.ne.s32.totalorder %s83, %s86
    %p92 = scmp.eq.s32.totalorder %s12, 0
    %p93 = por %p91, %p92
    %p94 = scmp.ne.s32.totalorder %s83, %s86
    %p95 = scmp.eq.s32.totalorder %s17, 1
    %p96 = por %p94, %p95
    %p97 = scmp.ne.s32.totalorder %s86, %s87
    %p98 = scmp.eq.s32.totalorder %s17, 0
    %p99 = por %p97, %p98
    %p100 = scmp.ne.s32.totalorder %s86, %s87
    %p101 = scmp.eq.s32.totalorder %s18, 1
    %p102 = por %p100, %p101
    %p104 = scmp.ne.s32.totalorder %s87, %s103
    %p105 = scmp.eq.s32.totalorder %s18, 0
    %p106 = por %p104, %p105
    %s107 = ssub.s32 %s19, %s31
    %p108 = scmp.eq.s32.totalorder %s107, 0
    %s110 = sadd.s32 %s109, 1
    %s111 = scalar_select %p108, %s109, %s110
    %p114 = pneg %p108
    %p115 = scmp.eq.s32.totalorder %s12, 1
    %p116 = por %p114, %p115
    %p117 = scmp.ne.s32.totalorder %s109, %s112
    %p118 = scmp.eq.s32.totalorder %s12, 0
    %p119 = por %p117, %p118
    %p120 = scmp.ne.s32.totalorder %s109, %s112
    %p121 = scmp.eq.s32.totalorder %s17, 1
    %p122 = por %p120, %p121
    %p123 = scmp.ne.s32.totalorder %s112, %s113
    %p124 = scmp.eq.s32.totalorder %s17, 0
    %p125 = por %p123, %p124
    %p126 = scmp.ne.s32.totalorder %s112, %s113
    %p127 = scmp.eq.s32.totalorder %s18, 1
    %p128 = por %p126, %p127
    %p130 = scmp.ne.s32.totalorder %s113, %s129
    %p131 = scmp.eq.s32.totalorder %s18, 0
    %p132 = por %p130, %p131
    %p133 = scmp.lt.s32.totalorder %s19, 0
    %s134 = ssub.s32 0, %s19
    %s135 = scalar_select %p133, %s134, %s19
    %s136 = sand.u32 %s135, 1
    %s137 = ssub.s32 0, %s136
    %s138 = scalar_select %p133, %s137, %s136
    %p139 = scmp.ne.s32.totalorder %s138, 0
    %p140 = scmp.lt.s32.totalorder %s138, 0
    %p141 = pnand %p140, %p139
    %p142 = pneg %p141
    %s143 = sadd.s32 %s138, 2
    %s144 = scalar_select %p142, %s143, %s138
    %p145 = scmp.lt.s32.totalorder %s31, 0
    %s146 = ssub.s32 0, %s31
    %s147 = scalar_select %p145, %s146, %s31
    %s148 = sand.u32 %s147, 1
    %s149 = ssub.s32 0, %s148
    %s150 = scalar_select %p145, %s149, %s148
    %p151 = scmp.ne.s32.totalorder %s150, 0
    %p152 = scmp.lt.s32.totalorder %s150, 0
    %p153 = pnand %p152, %p151
    %p154 = pneg %p153
    %s155 = sadd.s32 %s150, 2
    %s156 = scalar_select %p154, %s155, %s150
    %s157 = ssub.s32 %s144, %s156
    %s158 = ssub.s32 %s20, %s27
    %s159 = sor.u32 %s157, %s158
    %p160 = scmp.eq.s32.totalorder %s159, 0
    %s162 = sadd.s32 %s161, 1
    %s163 = scalar_select %p160, %s161, %s162
    %p166 = pneg %p160
    %p167 = scmp.eq.s32.totalorder %s12, 1
    %p168 = por %p166, %p167
    %p169 = scmp.ne.s32.totalorder %s161, %s164
    %p170 = scmp.eq.s32.totalorder %s12, 0
    %p171 = por %p169, %p170
    %p172 = scmp.ne.s32.totalorder %s161, %s164
    %p173 = scmp.eq.s32.totalorder %s17, 1
    %p174 = por %p172, %p173
    %p175 = scmp.ne.s32.totalorder %s164, %s165
    %p176 = scmp.eq.s32.totalorder %s17, 0
    %p177 = por %p175, %p176
    %p178 = scmp.ne.s32.totalorder %s164, %s165
    %p179 = scmp.eq.s32.totalorder %s18, 1
    %p180 = por %p178, %p179
    %p182 = scmp.ne.s32.totalorder %s165, %s181
    %p183 = scmp.eq.s32.totalorder %s18, 0
    %p184 = por %p182, %p183
    %s185 = ssub.s32 %s19, %s31
    %s186 = ssub.s32 %s20, %s27
    %s187 = sor.u32 %s185, %s186
    %p188 = scmp.eq.s32.totalorder %s187, 0
    %s190 = sadd.s32 %s189, 1
    %s191 = scalar_select %p188, %s189, %s190
    %p194 = pneg %p188
    %p195 = scmp.eq.s32.totalorder %s12, 1
    %p196 = por %p194, %p195
    %p197 = scmp.ne.s32.totalorder %s189, %s192
    %p198 = scmp.eq.s32.totalorder %s12, 0
    %p199 = por %p197, %p198
    %p200 = scmp.ne.s32.totalorder %s189, %s192
    %p201 = scmp.eq.s32.totalorder %s17, 1
    %p202 = por %p200, %p201
    %p203 = scmp.ne.s32.totalorder %s192, %s193
    %p204 = scmp.eq.s32.totalorder %s17, 0
    %p205 = por %p203, %p204
    %p206 = scmp.ne.s32.totalorder %s192, %s193
    %p207 = scmp.eq.s32.totalorder %s18, 1
    %p208 = por %p206, %p207
    %p210 = scmp.ne.s32.totalorder %s193, %s209
    %p211 = scmp.eq.s32.totalorder %s18, 0
    %p212 = por %p210, %p211
    %p213 = scmp.le.s32.totalorder 1, %s12
    %p214 = scmp.lt.s32.totalorder %s12, 3
    %p215 = pnand %p213, %p214
    %p216 = pneg %p215
    // Predicated region
    $region9: #{tpu_custom_call.1} parent=5 // pred_check
      _
    $region10: #{tpu_custom_call.1} parent=5 // pred_check_branch
      %218 = sbr.rel (%p215) target = $region12
    $region11: #{tpu_custom_call.1} parent=5 // pred_region
      %s219 = ssub.s32 %s12, 1
      // Predicated region
      $region13: #{tpu_custom_call.1} parent=11 // pred_check
        %p220 = pneg %p45
      $region14: #{tpu_custom_call.1} parent=11 // pred_check_branch
        %222 = sbr.rel (%p220) target = $region16
      $region15: #{tpu_custom_call.1} parent=11 // pred_region
        _
      $region16: #{tpu_custom_call.1} parent=11 // pred_fallthru
        _
    $region12: #{tpu_custom_call.1} parent=5 // pred_fallthru
      _
    %p223 = scmp.lt.s32.totalorder %s12, 2
    // Predicated region
    $region17: #{tpu_custom_call.1} parent=5 // pred_check
      %p224 = pneg %p223
    $region18: #{tpu_custom_call.1} parent=5 // pred_check_branch
      %226 = sbr.rel (%p224) target = $region20
    $region19: #{tpu_custom_call.1} parent=5 // pred_region
      // Predicated region
      $region21: #{tpu_custom_call.1} parent=19 // pred_check
        %p227 = pneg %p67
      $region22: #{tpu_custom_call.1} parent=19 // pred_check_branch
        %229 = sbr.rel (%p227) target = $region24
      $region23: #{tpu_custom_call.1} parent=19 // pred_region
        %p230 = scmp.lt.s32.totalorder %s19, 1
        %s231 = scalar_select %p230, %s19, 1
        %p232 = scmp.lt.s32.totalorder %s20, 0
        %s233 = scalar_select %p232, %s20, 0
        %s234 = sadd.s32 %s233, %s231
        %s235 = smul.addr %s234, 4
        %s236 = scalar_lea.vmem %s1, %s235
      $region24: #{tpu_custom_call.1} parent=19 // pred_fallthru
        _
      // Predicated region
      $region25: #{tpu_custom_call.1} parent=19 // pred_check
        %p237 = pneg %p93
      $region26: #{tpu_custom_call.1} parent=19 // pred_check_branch
        %239 = sbr.rel (%p237) target = $region28
      $region27: #{tpu_custom_call.1} parent=19 // pred_region
        %p240 = scmp.lt.s32.totalorder %s19, 1
        %s241 = scalar_select %p240, %s19, 1
        %s242 = smul.addr %s241, 8
        %s243 = scalar_lea.vmem %s2, %s242
      $region28: #{tpu_custom_call.1} parent=19 // pred_fallthru
        _
      // Predicated region
      $region29: #{tpu_custom_call.1} parent=19 // pred_check
        %p244 = pneg %p119
      $region30: #{tpu_custom_call.1} parent=19 // pred_check_branch
        %246 = sbr.rel (%p244) target = $region32
      $region31: #{tpu_custom_call.1} parent=19 // pred_region
        %p247 = scmp.lt.s32.totalorder %s19, 1
        %s248 = scalar_select %p247, %s19, 1
        %s249 = smul.addr %s248, 8
        %s250 = scalar_lea.vmem %s3, %s249
      $region32: #{tpu_custom_call.1} parent=19 // pred_fallthru
        _
      // Predicated region
      $region33: #{tpu_custom_call.1} parent=19 // pred_check
        %p251 = pneg %p171
      $region34: #{tpu_custom_call.1} parent=19 // pred_check_branch
        %253 = sbr.rel (%p251) target = $region36
      $region35: #{tpu_custom_call.1} parent=19 // pred_region
        %p254 = scmp.lt.s32.totalorder %s19, 0
        %s255 = ssub.s32 0, %s19
        %s256 = scalar_select %p254, %s255, %s19
        %s257 = sand.u32 %s256, 1
        %s258 = ssub.s32 0, %s257
        %s259 = scalar_select %p254, %s258, %s257
        %p260 = scmp.ne.s32.totalorder %s259, 0
        %p261 = scmp.lt.s32.totalorder %s259, 0
        %p262 = pnand %p261, %p260
        %p263 = pneg %p262
        %s264 = sadd.s32 %s259, 2
        %s265 = scalar_select %p263, %s264, %s259
        %p266 = scmp.lt.s32.totalorder %s265, 1
        %s267 = scalar_select %p266, %s265, 1
        %p268 = scmp.lt.s32.totalorder %s20, 0
        %s269 = scalar_select %p268, %s20, 0
        %s270 = sadd.s32 %s269, %s267
        %s271 = smul.addr %s270, 4
        %s272 = scalar_lea.vmem %s4, %s271
        %p273 = scmp.lt.s32.totalorder %s19, 0
        %s274 = ssub.s32 0, %s19
        %s275 = scalar_select %p273, %s274, %s19
        %s276 = sand.u32 %s275, 1
        %s277 = ssub.s32 0, %s276
        %s278 = scalar_select %p273, %s277, %s276
        %p279 = scmp.ne.s32.totalorder %s278, 0
        %p280 = scmp.lt.s32.totalorder %s278, 0
        %p281 = pnand %p280, %p279
        %p282 = pneg %p281
        %s283 = sadd.s32 %s278, 2
        %s284 = scalar_select %p282, %s283, %s278
      $region36: #{tpu_custom_call.1} parent=19 // pred_fallthru
        _
    $region20: #{tpu_custom_call.1} parent=5 // pred_fallthru
      _
    %p285 = scmp.le.s32.totalorder 1, %s12
    %p286 = scmp.lt.s32.totalorder %s12, 3
    %p287 = pnand %p285, %p286
    %p288 = pneg %p287
    // Predicated region
    $region37: #{tpu_custom_call.1} parent=5 // pred_check
      _
    $region38: #{tpu_custom_call.1} parent=5 // pred_check_branch
      %290 = sbr.rel (%p287) target = $region40
    $region39: #{tpu_custom_call.1} parent=5 // pred_region
      %s291 = ssub.s32 %s12, 1
      %p292 = pneg %p45
      %p293 = pneg %p42
      %p294 = scmp.lt.s32.totalorder %s21, 1
      %s295 = scalar_select %p294, %s21, 1
      %p296 = scmp.lt.s32.totalorder %s22, 0
      %s297 = scalar_select %p296, %s22, 0
      %s298 = sadd.s32 %s297, %s295
      %s299 = smul.addr %s298, 4
      %s300 = scalar_lea.vmem %s1, %s299
      %p301 = pneg %p73
      %p302 = pneg %p70
      %p303 = scmp.lt.s32.totalorder %s21, 1
      %s304 = scalar_select %p303, %s21, 1
      %s305 = smul.addr %s304, 8
      %s306 = scalar_lea.vmem %s2, %s305
      %p307 = pneg %p99
      %p308 = pneg %p96
      %p309 = scmp.lt.s32.totalorder %s21, 1
      %s310 = scalar_select %p309, %s21, 1
      %s311 = smul.addr %s310, 8
      %s312 = scalar_lea.vmem %s3, %s311
      %p313 = pneg %p125
      %p314 = pneg %p122
      %p315 = scmp.lt.s32.totalorder %s21, 0
      %s316 = ssub.s32 0, %s21
      %s317 = scalar_select %p315, %s316, %s21
      %s318 = sand.u32 %s317, 1
      %s319 = ssub.s32 0, %s318
      %s320 = scalar_select %p315, %s319, %s318
      %p321 = scmp.ne.s32.totalorder %s320, 0
      %p322 = scmp.lt.s32.totalorder %s320, 0
      %p323 = pnand %p322, %p321
      %p324 = pneg %p323
      %s325 = sadd.s32 %s320, 2
      %s326 = scalar_select %p324, %s325, %s320
      %p327 = scmp.lt.s32.totalorder %s326, 1
      %s328 = scalar_select %p327, %s326, 1
      %p329 = scmp.lt.s32.totalorder %s22, 0
      %s330 = scalar_select %p329, %s22, 0
      %s331 = sadd.s32 %s330, %s328
      %s332 = smul.addr %s331, 4
      %s333 = scalar_lea.vmem %s4, %s332
      %p334 = pneg %p177
      %p335 = pneg %p174
      %p336 = pneg %p205
      %p337 = pneg %p202
      %p338 = scmp.lt.s32.totalorder %s21, 1
      %s339 = scalar_select %p338, %s21, 1
      %p340 = scmp.lt.s32.totalorder %s22, 0
      %s341 = scalar_select %p340, %s22, 0
      %s342 = sadd.s32 %s341, %s339
      %s343 = smul.addr %s342, 4
      %s344 = scalar_lea.vmem %s5, %s343
      %p345 = scmp.lt.s32.totalorder %s21, 1
      %s346 = scalar_select %p345, %s21, 1
      %p347 = scmp.lt.s32.totalorder %s22, 0
      %s348 = scalar_select %p347, %s22, 0
      %s349 = sadd.s32 %s348, %s346
      %s350 = smul.addr %s349, 4
      %s351 = scalar_lea.vmem %s1, %s350
      %p352 = scmp.lt.s32.totalorder %s21, 1
      %s353 = scalar_select %p352, %s21, 1
      %s354 = smul.addr %s353, 8
      %s355 = scalar_lea.vmem %s2, %s354
      %p356 = scmp.lt.s32.totalorder %s21, 1
      %s357 = scalar_select %p356, %s21, 1
      %s358 = smul.addr %s357, 8
      %s359 = scalar_lea.vmem %s3, %s358
      %p360 = scmp.lt.s32.totalorder %s21, 0
      %s361 = ssub.s32 0, %s21
      %s362 = scalar_select %p360, %s361, %s21
      %s363 = sand.u32 %s362, 1
      %s364 = ssub.s32 0, %s363
      %s365 = scalar_select %p360, %s364, %s363
      %p366 = scmp.ne.s32.totalorder %s365, 0
      %p367 = scmp.lt.s32.totalorder %s365, 0
      %p368 = pnand %p367, %p366
      %p369 = pneg %p368
      %s370 = sadd.s32 %s365, 2
      %s371 = scalar_select %p369, %s370, %s365
      %p372 = scmp.lt.s32.totalorder %s371, 1
      %s373 = scalar_select %p372, %s371, 1
      %p374 = scmp.lt.s32.totalorder %s22, 0
      %s375 = scalar_select %p374, %s22, 0
      %s376 = sadd.s32 %s375, %s373
      %s377 = smul.addr %s376, 4
      %s378 = scalar_lea.vmem %s4, %s377
      %p379 = scmp.lt.s32.totalorder %s21, 0
      %s380 = ssub.s32 0, %s21
      %s381 = scalar_select %p379, %s380, %s21
      %s382 = sand.u32 %s381, 1
      %s383 = ssub.s32 0, %s382
      %s384 = scalar_select %p379, %s383, %s382
      %p385 = scmp.ne.s32.totalorder %s384, 0
      %p386 = scmp.lt.s32.totalorder %s384, 0
      %p387 = pnand %p386, %p385
      %p388 = pneg %p387
      %s389 = sadd.s32 %s384, 2
      %s390 = scalar_select %p388, %s389, %s384
      %p391 = scmp.lt.s32.totalorder %s21, 1
      %s392 = scalar_select %p391, %s21, 1
      %p393 = scmp.lt.s32.totalorder %s22, 0
      %s394 = scalar_select %p393, %s22, 0
      %s395 = sadd.s32 %s394, %s392
      %s396 = smul.addr %s395, 4
      %s397 = scalar_lea.vmem %s5, %s396
      %vm398 = vcmask 34816
      %399 = vst.msk [vmem:[%s397] sm:$0x7] %vm398, 0.0
      %p400 = scmp.lt.s32.totalorder %s21, 1
      %s401 = scalar_select %p400, %s21, 1
      %p402 = scmp.lt.s32.totalorder %s22, 0
      %s403 = scalar_select %p402, %s22, 0
      %s404 = sadd.s32 %s403, %s401
      %s405 = smul.addr %s404, 4
      %s406 = scalar_lea.vmem %s5, %s405
      // Predicated region
      $region41: #{tpu_custom_call.1} parent=39 // pred_check
        %p407 = pneg %p202
      $region42: #{tpu_custom_call.1} parent=39 // pred_check_branch
        %409 = sbr.rel (%p407) target = $region44
      $region43: #{tpu_custom_call.1} parent=39 // pred_region
        _
      $region44: #{tpu_custom_call.1} parent=39 // pred_fallthru
        _
    $region40: #{tpu_custom_call.1} parent=5 // pred_fallthru
      _
    %p410 = scmp.le.s32.totalorder 2, %s12
    // Predicated region
    $region45: #{tpu_custom_call.1} parent=5 // pred_check
      %p411 = pneg %p410
    $region46: #{tpu_custom_call.1} parent=5 // pred_check_branch
      %413 = sbr.rel (%p411) target = $region48
    $region47: #{tpu_custom_call.1} parent=5 // pred_region
      %s414 = ssub.s32 %s12, 2
      // Predicated region
      $region49: #{tpu_custom_call.1} parent=47 // pred_check
        %p415 = pneg %p208
      $region50: #{tpu_custom_call.1} parent=47 // pred_check_branch
        %417 = sbr.rel (%p415) target = $region52
      $region51: #{tpu_custom_call.1} parent=47 // pred_region
        %p418 = scmp.lt.s32.totalorder %s23, 1
        %s419 = scalar_select %p418, %s23, 1
        %p420 = scmp.lt.s32.totalorder %s24, 0
        %s421 = scalar_select %p420, %s24, 0
        %s422 = sadd.s32 %s421, %s419
        %s423 = smul.addr %s422, 4
        %s424 = scalar_lea.vmem %s5, %s423
      $region52: #{tpu_custom_call.1} parent=47 // pred_fallthru
        _
    $region48: #{tpu_custom_call.1} parent=5 // pred_fallthru
      _
  $region6: #{tpu_custom_call.1} parent=0 // loop_footer
    %s16 = sadd.s32 1, %s12
  $region7: #{tpu_custom_call.1} parent=0 // loop_footer_branch
    %11 = sbr.rel target = $region3
  $region8: #{tpu_custom_call.1} parent=0 // loop_exit
    _

</llo_original>
